<compile_context>
chip_gen: v7x
topology: tpu7x:2x2x1
jax: 0.10.0
libtpu: 0.0.40
codegen_flags: <defaults>
</compile_context>

<pallas_src>
import jax
import jax.numpy as jnp
from jax import lax
from jax.experimental import pallas as pl
from jax.experimental.pallas import tpu as pltpu


def _make_kernel(H, W, Cin, Cin_pad, pad, offsets):
    Wp = W + 2 * pad
    NQ = (H - 1) * Wp + W        # lane span of the padded-flat image covering all outputs

    def kernel(x_ref, w_ref, b_ref, o_ref, xp):
        # x_ref: (1, Cin, H*W)    w_ref: (Cout, D*Cin_pad)    b_ref: (Cout, 1)
        # o_ref: (1, Cout, H*W)   xp: VMEM (Cin_pad, Hp*Wp) flattened zero-padded image
        #
        # 1) zero-pad inside the kernel (no separate XLA transpose/pad HBM passes).
        xp[...] = jnp.zeros_like(xp)
        for h in range(H):                           # scatter H contiguous image rows
            dst = (h + pad) * Wp + pad
            xp[0:Cin, dst:dst + W] = x_ref[0, :, h * W:(h + 1) * W]

        # 2) im2col: one pure lane-window per merged tap offset; concatenate along
        #    the contraction dim (each slab is Cin_pad=8 sublanes -> tile-aligned).
        slabs = []
        for (dh, dw) in offsets:                     # static list, D = 13 offsets
            off = (pad + dh) * Wp + (pad + dw)
            slabs.append(xp[:, off:off + NQ])        # (Cin_pad, NQ)
        x_taps = jnp.concatenate(slabs, axis=0)      # (D*Cin_pad, NQ)

        # 3) one well-shaped MXU matmul; 1/num_convs is already folded into w_ref.
        acc = jnp.dot(w_ref[...], x_taps, preferred_element_type=jnp.float32)
        res = (acc + b_ref[...]).astype(o_ref.dtype)                 # (Cout, NQ)

        # 4) compact the padded-flat columns into the lane-dense (Cout, H*W) output.
        for h in range(H):
            o_ref[0, :, h * W:(h + 1) * W] = res[:, h * Wp:h * Wp + W]

    return kernel


def inception_block_v2_pallas(x_nchw, weights, biases, kernel_shapes):
    """x_nchw: (N, Cin, H, W); weights[i]: (Cout, Cin, kh, kw). Returns (N, Cout, H, W)."""
    N, Cin, H, W = x_nchw.shape
    Cout = weights[0].shape[0]
    num_convs = len(weights)

    # --- host-side weight fusion: merge every tap that hits the same (dh, dw) offset ---
    order, merged = [], {}
    for (kh, kw), wgt in zip(kernel_shapes, weights):
        rh, rw = (kh - 1) // 2, (kw - 1) // 2
        for a in range(kh):
            for b in range(kw):
                off = (a - rh, b - rw)
                m = wgt[:, :, a, b].astype(jnp.float32)              # (Cout, Cin)
                if off in merged:
                    merged[off] = merged[off] + m
                else:
                    merged[off] = m
                    order.append(off)

    Cin_pad = -(-Cin // 8) * 8                       # sublane-align each contraction block
    blocks = [jnp.pad(merged[o], ((0, 0), (0, Cin_pad - Cin))) for o in order]
    w_fused = (jnp.concatenate(blocks, axis=1) * (1.0 / num_convs)).astype(jnp.float32)
    b_fused = (jnp.sum(jnp.stack(biases), axis=0).astype(jnp.float32)
               * (1.0 / num_convs)).reshape(Cout, 1)

    pad = max(max(kh, kw) for kh, kw in kernel_shapes) // 2          # 3 for kernels up to 7
    Hp, Wp = H + 2 * pad, W + 2 * pad
    HW = H * W
    K = w_fused.shape[1]                                             # D * Cin_pad

    # Keep NCHW; only flatten spatial dims (free contiguous reshape, no transpose, no pad pass).
    x_flat = x_nchw.reshape(N, Cin, HW).astype(jnp.float32)

    kernel = _make_kernel(H, W, Cin, Cin_pad, pad, tuple(order))

    # NOTE: for large TimesNet shapes (e.g. H=W=128, C=64) add an H-strip grid axis with halo
    # handling and re-derive VMEM budgets for v7x (64 MiB); at 16x16 one image per step is fine.
    out_flat = pl.pallas_call(
        kernel,
        out_shape=jax.ShapeDtypeStruct((N, Cout, HW), jnp.float32),
        grid=(N,),
        in_specs=[
            pl.BlockSpec((1, Cin, HW), lambda n: (n, 0, 0)),
            pl.BlockSpec((Cout, K), lambda n: (0, 0)),
            pl.BlockSpec((Cout, 1), lambda n: (0, 0)),
        ],
        out_specs=pl.BlockSpec((1, Cout, HW), lambda n: (n, 0, 0)),
        scratch_shapes=[pltpu.VMEM((Cin_pad, Hp * Wp), jnp.float32)],
        compiler_params=pltpu.CompilerParams(dimension_semantics=("parallel",)),
    )(x_flat, w_fused, b_fused)

    return out_flat.reshape(N, Cout, H, W)            # free contiguous reshape back to NCHW


def _reference(x_nchw, weights, biases, kernel_shapes):
    """Pure-JAX reference mirroring the PyTorch forward (NCHW conv, stack, mean)."""
    outs = []
    for (kh, kw), wgt, b in zip(kernel_shapes, weights, biases):
        ph, pw = (kh - 1) // 2, (kw - 1) // 2
        y = lax.conv_general_dilated(
            x_nchw.astype(jnp.float32), wgt.astype(jnp.float32),
            window_strides=(1, 1), padding=((ph, ph), (pw, pw)),
            dimension_numbers=("NCHW", "OIHW", "NCHW"))
        outs.append(y + b.reshape(1, -1, 1, 1))
    return jnp.mean(jnp.stack(outs, axis=-1), axis=-1)


def make_params(key, in_channels, out_channels, num_kernels=6):
    """Deterministic kaiming-normal(fan_out, relu) weights, zero biases."""
    kernel_shapes = []
    for i in range(num_kernels // 2):
        kernel_shapes.append((1, 2 * i + 3))
        kernel_shapes.append((2 * i + 3, 1))
    kernel_shapes.append((1, 1))

    weights, biases = [], []
    for (kh, kw) in kernel_shapes:
        key, sub = jax.random.split(key)
        fan_out = out_channels * kh * kw
        std = (2.0 / fan_out) ** 0.5
        weights.append(std * jax.random.normal(sub, (out_channels, in_channels, kh, kw),
                                               dtype=jnp.float32))
        biases.append(jnp.zeros((out_channels,), jnp.float32))
    return weights, biases, kernel_shapes


if __name__ == "__main__":
    key = jax.random.PRNGKey(0)
    N, Cin, H, W = 2, 4, 16, 16
    Cout, num_kernels = 8, 6

    kx, kp = jax.random.split(key)
    x = jax.random.normal(kx, (N, Cin, H, W), dtype=jnp.float32)
    weights, biases, kernel_shapes = make_params(kp, Cin, Cout, num_kernels)

    out = inception_block_v2_pallas(x, weights, biases, kernel_shapes)
    out = jax.block_until_ready(out)

    ref = _reference(x, weights, biases, kernel_shapes)
    assert out.shape == (N, Cout, H, W)
    assert jnp.max(jnp.abs(out - ref)) < 1e-4, "mismatch vs conv reference"

    print("KERNEL_OK")
</pallas_src>

<mosaic_0001>
module attributes {stable_mosaic.version = 11 : i64} {
  func.func @kernel(%arg0: i32, %arg1: memref<1x4x256xf32, #tpu.memory_space<vmem>>, %arg2: memref<8x104xf32, #tpu.memory_space<vmem>>, %arg3: memref<8x1xf32, #tpu.memory_space<vmem>>, %arg4: memref<1x8x256xf32, #tpu.memory_space<vmem>>, %arg5: memref<8x484xf32, #tpu.memory_space<vmem>>) attributes {dimension_semantics = [#tpu.dimension_semantics<parallel>], iteration_bounds = array<i64: 2>, scalar_prefetch = 0 : i64, scratch_operands = 1 : i64, tpu.core_type = #tpu.core_type<tc>, window_params = [{transform_indices = @transform_0, window_bounds = array<i64: 1, 4, 256>}, {pipeline_mode = #tpu.pipeline_mode<synchronous>, transform_indices = @transform_1, window_bounds = array<i64: 8, 104>}, {pipeline_mode = #tpu.pipeline_mode<synchronous>, transform_indices = @transform_2, window_bounds = array<i64: 8, 1>}, {transform_indices = @transform_3, window_bounds = array<i64: 1, 8, 256>}]} {
    %cst = arith.constant 0.000000e+00 : f32
    %0 = vector.broadcast %cst : f32 to vector<8x484xf32>
    %c0 = arith.constant 0 : index
    %c0_0 = arith.constant 0 : index
    %1 = vector.load %arg5[%c0, %c0_0] : memref<8x484xf32, #tpu.memory_space<vmem>>, vector<8x484xf32>
    tpu.vector_store %arg5[%c0, %c0_0], %0 {strides = array<i32>} : memref<8x484xf32, #tpu.memory_space<vmem>>, vector<8x484xf32>,
    %c0_1 = arith.constant 0 : index
    %c0_2 = arith.constant 0 : index
    %c0_3 = arith.constant 0 : index
    %2 = vector.load %arg1[%c0_1, %c0_2, %c0_3] : memref<1x4x256xf32, #tpu.memory_space<vmem>>, vector<1x4x16xf32>
    %3 = vector.shape_cast %2 : vector<1x4x16xf32> to vector<4x16xf32>
    %c0_4 = arith.constant 0 : index
    %c69 = arith.constant 69 : index
    %4 = vector.load %arg5[%c0_4, %c69] : memref<8x484xf32, #tpu.memory_space<vmem>>, vector<4x16xf32>
    tpu.vector_store %arg5[%c0_4, %c69], %3 {strides = array<i32>} : memref<8x484xf32, #tpu.memory_space<vmem>>, vector<4x16xf32>,
    %c0_5 = arith.constant 0 : index
    %c0_6 = arith.constant 0 : index
    %c16 = arith.constant 16 : index
    %5 = vector.load %arg1[%c0_5, %c0_6, %c16] : memref<1x4x256xf32, #tpu.memory_space<vmem>>, vector<1x4x16xf32>
    %6 = vector.shape_cast %5 : vector<1x4x16xf32> to vector<4x16xf32>
    %c0_7 = arith.constant 0 : index
    %c91 = arith.constant 91 : index
    %7 = vector.load %arg5[%c0_7, %c91] : memref<8x484xf32, #tpu.memory_space<vmem>>, vector<4x16xf32>
    tpu.vector_store %arg5[%c0_7, %c91], %6 {strides = array<i32>} : memref<8x484xf32, #tpu.memory_space<vmem>>, vector<4x16xf32>,
    %c0_8 = arith.constant 0 : index
    %c0_9 = arith.constant 0 : index
    %c32 = arith.constant 32 : index
    %8 = vector.load %arg1[%c0_8, %c0_9, %c32] : memref<1x4x256xf32, #tpu.memory_space<vmem>>, vector<1x4x16xf32>
    %9 = vector.shape_cast %8 : vector<1x4x16xf32> to vector<4x16xf32>
    %c0_10 = arith.constant 0 : index
    %c113 = arith.constant 113 : index
    %10 = vector.load %arg5[%c0_10, %c113] : memref<8x484xf32, #tpu.memory_space<vmem>>, vector<4x16xf32>
    tpu.vector_store %arg5[%c0_10, %c113], %9 {strides = array<i32>} : memref<8x484xf32, #tpu.memory_space<vmem>>, vector<4x16xf32>,
    %c0_11 = arith.constant 0 : index
    %c0_12 = arith.constant 0 : index
    %c48 = arith.constant 48 : index
    %11 = vector.load %arg1[%c0_11, %c0_12, %c48] : memref<1x4x256xf32, #tpu.memory_space<vmem>>, vector<1x4x16xf32>
    %12 = vector.shape_cast %11 : vector<1x4x16xf32> to vector<4x16xf32>
    %c0_13 = arith.constant 0 : index
    %c135 = arith.constant 135 : index
    %13 = vector.load %arg5[%c0_13, %c135] : memref<8x484xf32, #tpu.memory_space<vmem>>, vector<4x16xf32>
    tpu.vector_store %arg5[%c0_13, %c135], %12 {strides = array<i32>} : memref<8x484xf32, #tpu.memory_space<vmem>>, vector<4x16xf32>,
    %c0_14 = arith.constant 0 : index
    %c0_15 = arith.constant 0 : index
    %c64 = arith.constant 64 : index
    %14 = vector.load %arg1[%c0_14, %c0_15, %c64] : memref<1x4x256xf32, #tpu.memory_space<vmem>>, vector<1x4x16xf32>
    %15 = vector.shape_cast %14 : vector<1x4x16xf32> to vector<4x16xf32>
    %c0_16 = arith.constant 0 : index
    %c157 = arith.constant 157 : index
    %16 = vector.load %arg5[%c0_16, %c157] : memref<8x484xf32, #tpu.memory_space<vmem>>, vector<4x16xf32>
    tpu.vector_store %arg5[%c0_16, %c157], %15 {strides = array<i32>} : memref<8x484xf32, #tpu.memory_space<vmem>>, vector<4x16xf32>,
    %c0_17 = arith.constant 0 : index
    %c0_18 = arith.constant 0 : index
    %c80 = arith.constant 80 : index
    %17 = vector.load %arg1[%c0_17, %c0_18, %c80] : memref<1x4x256xf32, #tpu.memory_space<vmem>>, vector<1x4x16xf32>
    %18 = vector.shape_cast %17 : vector<1x4x16xf32> to vector<4x16xf32>
    %c0_19 = arith.constant 0 : index
    %c179 = arith.constant 179 : index
    %19 = vector.load %arg5[%c0_19, %c179] : memref<8x484xf32, #tpu.memory_space<vmem>>, vector<4x16xf32>
    tpu.vector_store %arg5[%c0_19, %c179], %18 {strides = array<i32>} : memref<8x484xf32, #tpu.memory_space<vmem>>, vector<4x16xf32>,
    %c0_20 = arith.constant 0 : index
    %c0_21 = arith.constant 0 : index
    %c96 = arith.constant 96 : index
    %20 = vector.load %arg1[%c0_20, %c0_21, %c96] : memref<1x4x256xf32, #tpu.memory_space<vmem>>, vector<1x4x16xf32>
    %21 = vector.shape_cast %20 : vector<1x4x16xf32> to vector<4x16xf32>
    %c0_22 = arith.constant 0 : index
    %c201 = arith.constant 201 : index
    %22 = vector.load %arg5[%c0_22, %c201] : memref<8x484xf32, #tpu.memory_space<vmem>>, vector<4x16xf32>
    tpu.vector_store %arg5[%c0_22, %c201], %21 {strides = array<i32>} : memref<8x484xf32, #tpu.memory_space<vmem>>, vector<4x16xf32>,
    %c0_23 = arith.constant 0 : index
    %c0_24 = arith.constant 0 : index
    %c112 = arith.constant 112 : index
    %23 = vector.load %arg1[%c0_23, %c0_24, %c112] : memref<1x4x256xf32, #tpu.memory_space<vmem>>, vector<1x4x16xf32>
    %24 = vector.shape_cast %23 : vector<1x4x16xf32> to vector<4x16xf32>
    %c0_25 = arith.constant 0 : index
    %c223 = arith.constant 223 : index
    %25 = vector.load %arg5[%c0_25, %c223] : memref<8x484xf32, #tpu.memory_space<vmem>>, vector<4x16xf32>
    tpu.vector_store %arg5[%c0_25, %c223], %24 {strides = array<i32>} : memref<8x484xf32, #tpu.memory_space<vmem>>, vector<4x16xf32>,
    %c0_26 = arith.constant 0 : index
    %c0_27 = arith.constant 0 : index
    %c128 = arith.constant 128 : index
    %26 = vector.load %arg1[%c0_26, %c0_27, %c128] : memref<1x4x256xf32, #tpu.memory_space<vmem>>, vector<1x4x16xf32>
    %27 = vector.shape_cast %26 : vector<1x4x16xf32> to vector<4x16xf32>
    %c0_28 = arith.constant 0 : index
    %c245 = arith.constant 245 : index
    %28 = vector.load %arg5[%c0_28, %c245] : memref<8x484xf32, #tpu.memory_space<vmem>>, vector<4x16xf32>
    tpu.vector_store %arg5[%c0_28, %c245], %27 {strides = array<i32>} : memref<8x484xf32, #tpu.memory_space<vmem>>, vector<4x16xf32>,
    %c0_29 = arith.constant 0 : index
    %c0_30 = arith.constant 0 : index
    %c144 = arith.constant 144 : index
    %29 = vector.load %arg1[%c0_29, %c0_30, %c144] : memref<1x4x256xf32, #tpu.memory_space<vmem>>, vector<1x4x16xf32>
    %30 = vector.shape_cast %29 : vector<1x4x16xf32> to vector<4x16xf32>
    %c0_31 = arith.constant 0 : index
    %c267 = arith.constant 267 : index
    %31 = vector.load %arg5[%c0_31, %c267] : memref<8x484xf32, #tpu.memory_space<vmem>>, vector<4x16xf32>
    tpu.vector_store %arg5[%c0_31, %c267], %30 {strides = array<i32>} : memref<8x484xf32, #tpu.memory_space<vmem>>, vector<4x16xf32>,
    %c0_32 = arith.constant 0 : index
    %c0_33 = arith.constant 0 : index
    %c160 = arith.constant 160 : index
    %32 = vector.load %arg1[%c0_32, %c0_33, %c160] : memref<1x4x256xf32, #tpu.memory_space<vmem>>, vector<1x4x16xf32>
    %33 = vector.shape_cast %32 : vector<1x4x16xf32> to vector<4x16xf32>
    %c0_34 = arith.constant 0 : index
    %c289 = arith.constant 289 : index
    %34 = vector.load %arg5[%c0_34, %c289] : memref<8x484xf32, #tpu.memory_space<vmem>>, vector<4x16xf32>
    tpu.vector_store %arg5[%c0_34, %c289], %33 {strides = array<i32>} : memref<8x484xf32, #tpu.memory_space<vmem>>, vector<4x16xf32>,
    %c0_35 = arith.constant 0 : index
    %c0_36 = arith.constant 0 : index
    %c176 = arith.constant 176 : index
    %35 = vector.load %arg1[%c0_35, %c0_36, %c176] : memref<1x4x256xf32, #tpu.memory_space<vmem>>, vector<1x4x16xf32>
    %36 = vector.shape_cast %35 : vector<1x4x16xf32> to vector<4x16xf32>
    %c0_37 = arith.constant 0 : index
    %c311 = arith.constant 311 : index
    %37 = vector.load %arg5[%c0_37, %c311] : memref<8x484xf32, #tpu.memory_space<vmem>>, vector<4x16xf32>
    tpu.vector_store %arg5[%c0_37, %c311], %36 {strides = array<i32>} : memref<8x484xf32, #tpu.memory_space<vmem>>, vector<4x16xf32>,
    %c0_38 = arith.constant 0 : index
    %c0_39 = arith.constant 0 : index
    %c192 = arith.constant 192 : index
    %38 = vector.load %arg1[%c0_38, %c0_39, %c192] : memref<1x4x256xf32, #tpu.memory_space<vmem>>, vector<1x4x16xf32>
    %39 = vector.shape_cast %38 : vector<1x4x16xf32> to vector<4x16xf32>
    %c0_40 = arith.constant 0 : index
    %c333 = arith.constant 333 : index
    %40 = vector.load %arg5[%c0_40, %c333] : memref<8x484xf32, #tpu.memory_space<vmem>>, vector<4x16xf32>
    tpu.vector_store %arg5[%c0_40, %c333], %39 {strides = array<i32>} : memref<8x484xf32, #tpu.memory_space<vmem>>, vector<4x16xf32>,
    %c0_41 = arith.constant 0 : index
    %c0_42 = arith.constant 0 : index
    %c208 = arith.constant 208 : index
    %41 = vector.load %arg1[%c0_41, %c0_42, %c208] : memref<1x4x256xf32, #tpu.memory_space<vmem>>, vector<1x4x16xf32>
    %42 = vector.shape_cast %41 : vector<1x4x16xf32> to vector<4x16xf32>
    %c0_43 = arith.constant 0 : index
    %c355 = arith.constant 355 : index
    %43 = vector.load %arg5[%c0_43, %c355] : memref<8x484xf32, #tpu.memory_space<vmem>>, vector<4x16xf32>
    tpu.vector_store %arg5[%c0_43, %c355], %42 {strides = array<i32>} : memref<8x484xf32, #tpu.memory_space<vmem>>, vector<4x16xf32>,
    %c0_44 = arith.constant 0 : index
    %c0_45 = arith.constant 0 : index
    %c224 = arith.constant 224 : index
    %44 = vector.load %arg1[%c0_44, %c0_45, %c224] : memref<1x4x256xf32, #tpu.memory_space<vmem>>, vector<1x4x16xf32>
    %45 = vector.shape_cast %44 : vector<1x4x16xf32> to vector<4x16xf32>
    %c0_46 = arith.constant 0 : index
    %c377 = arith.constant 377 : index
    %46 = vector.load %arg5[%c0_46, %c377] : memref<8x484xf32, #tpu.memory_space<vmem>>, vector<4x16xf32>
    tpu.vector_store %arg5[%c0_46, %c377], %45 {strides = array<i32>} : memref<8x484xf32, #tpu.memory_space<vmem>>, vector<4x16xf32>,
    %c0_47 = arith.constant 0 : index
    %c0_48 = arith.constant 0 : index
    %c240 = arith.constant 240 : index
    %47 = vector.load %arg1[%c0_47, %c0_48, %c240] : memref<1x4x256xf32, #tpu.memory_space<vmem>>, vector<1x4x16xf32>
    %48 = vector.shape_cast %47 : vector<1x4x16xf32> to vector<4x16xf32>
    %c0_49 = arith.constant 0 : index
    %c399 = arith.constant 399 : index
    %49 = vector.load %arg5[%c0_49, %c399] : memref<8x484xf32, #tpu.memory_space<vmem>>, vector<4x16xf32>
    tpu.vector_store %arg5[%c0_49, %c399], %48 {strides = array<i32>} : memref<8x484xf32, #tpu.memory_space<vmem>>, vector<4x16xf32>,
    %c0_50 = arith.constant 0 : index
    %c68 = arith.constant 68 : index
    %50 = vector.load %arg5[%c0_50, %c68] : memref<8x484xf32, #tpu.memory_space<vmem>>, vector<8x346xf32>
    %c0_51 = arith.constant 0 : index
    %c69_52 = arith.constant 69 : index
    %51 = vector.load %arg5[%c0_51, %c69_52] : memref<8x484xf32, #tpu.memory_space<vmem>>, vector<8x346xf32>
    %c0_53 = arith.constant 0 : index
    %c70 = arith.constant 70 : index
    %52 = vector.load %arg5[%c0_53, %c70] : memref<8x484xf32, #tpu.memory_space<vmem>>, vector<8x346xf32>
    %c0_54 = arith.constant 0 : index
    %c47 = arith.constant 47 : index
    %53 = vector.load %arg5[%c0_54, %c47] : memref<8x484xf32, #tpu.memory_space<vmem>>, vector<8x346xf32>
    %c0_55 = arith.constant 0 : index
    %c91_56 = arith.constant 91 : index
    %54 = vector.load %arg5[%c0_55, %c91_56] : memref<8x484xf32, #tpu.memory_space<vmem>>, vector<8x346xf32>
    %c0_57 = arith.constant 0 : index
    %c67 = arith.constant 67 : index
    %55 = vector.load %arg5[%c0_57, %c67] : memref<8x484xf32, #tpu.memory_space<vmem>>, vector<8x346xf32>
    %c0_58 = arith.constant 0 : index
    %c71 = arith.constant 71 : index
    %56 = vector.load %arg5[%c0_58, %c71] : memref<8x484xf32, #tpu.memory_space<vmem>>, vector<8x346xf32>
    %c0_59 = arith.constant 0 : index
    %c25 = arith.constant 25 : index
    %57 = vector.load %arg5[%c0_59, %c25] : memref<8x484xf32, #tpu.memory_space<vmem>>, vector<8x346xf32>
    %c0_60 = arith.constant 0 : index
    %c113_61 = arith.constant 113 : index
    %58 = vector.load %arg5[%c0_60, %c113_61] : memref<8x484xf32, #tpu.memory_space<vmem>>, vector<8x346xf32>
    %c0_62 = arith.constant 0 : index
    %c66 = arith.constant 66 : index
    %59 = vector.load %arg5[%c0_62, %c66] : memref<8x484xf32, #tpu.memory_space<vmem>>, vector<8x346xf32>
    %c0_63 = arith.constant 0 : index
    %c72 = arith.constant 72 : index
    %60 = vector.load %arg5[%c0_63, %c72] : memref<8x484xf32, #tpu.memory_space<vmem>>, vector<8x346xf32>
    %c0_64 = arith.constant 0 : index
    %c3 = arith.constant 3 : index
    %61 = vector.load %arg5[%c0_64, %c3] : memref<8x484xf32, #tpu.memory_space<vmem>>, vector<8x346xf32>
    %c0_65 = arith.constant 0 : index
    %c135_66 = arith.constant 135 : index
    %62 = vector.load %arg5[%c0_65, %c135_66] : memref<8x484xf32, #tpu.memory_space<vmem>>, vector<8x346xf32>
    %63 = tpu.concatenate %50, %51, %52, %53, %54, %55, %56, %57, %58, %59, %60, %61, %62 in 0 : vector<8x346xf32>, vector<8x346xf32>, vector<8x346xf32>, vector<8x346xf32>, vector<8x346xf32>, vector<8x346xf32>, vector<8x346xf32>, vector<8x346xf32>, vector<8x346xf32>, vector<8x346xf32>, vector<8x346xf32>, vector<8x346xf32>, vector<8x346xf32> -> vector<104x346xf32>
    %c0_67 = arith.constant 0 : index
    %c0_68 = arith.constant 0 : index
    %64 = vector.load %arg2[%c0_67, %c0_68] : memref<8x104xf32, #tpu.memory_space<vmem>>, vector<8x104xf32>
    %cst_69 = arith.constant dense<0.000000e+00> : vector<8x346xf32>
    %65 = tpu.matmul %64, %63, %cst_69 {dimension_numbers = #tpu.dot_dimension_numbers<[1], [0], [0], [1], [0, 0, 1, 1], [], []>} : vector<8x104xf32>, vector<104x346xf32>, vector<8x346xf32> -> vector<8x346xf32>
    %c0_70 = arith.constant 0 : index
    %c0_71 = arith.constant 0 : index
    %66 = vector.load %arg3[%c0_70, %c0_71] : memref<8x1xf32, #tpu.memory_space<vmem>>, vector<8x1xf32>
    %67 = vector.broadcast %66 : vector<8x1xf32> to vector<8x346xf32>
    %68 = arith.addf %65, %67 : vector<8x346xf32>
    %69 = vector.extract_strided_slice %68 {offsets = [0, 0], sizes = [8, 16], strides = [1, 1]} : vector<8x346xf32> to vector<8x16xf32>
    %c0_72 = arith.constant 0 : index
    %c0_73 = arith.constant 0 : index
    %c0_74 = arith.constant 0 : index
    %70 = vector.load %arg4[%c0_72, %c0_73, %c0_74] : memref<1x8x256xf32, #tpu.memory_space<vmem>>, vector<1x8x16xf32>
    %71 = vector.shape_cast %70 : vector<1x8x16xf32> to vector<8x16xf32>
    %72 = vector.shape_cast %69 : vector<8x16xf32> to vector<1x8x16xf32>
    tpu.vector_store %arg4[%c0_72, %c0_73, %c0_74], %72 {strides = array<i32>} : memref<1x8x256xf32, #tpu.memory_space<vmem>>, vector<1x8x16xf32>,
    %73 = vector.extract_strided_slice %68 {offsets = [0, 22], sizes = [8, 16], strides = [1, 1]} : vector<8x346xf32> to vector<8x16xf32>
    %c0_75 = arith.constant 0 : index
    %c0_76 = arith.constant 0 : index
    %c16_77 = arith.constant 16 : index
    %74 = vector.load %arg4[%c0_75, %c0_76, %c16_77] : memref<1x8x256xf32, #tpu.memory_space<vmem>>, vector<1x8x16xf32>
    %75 = vector.shape_cast %74 : vector<1x8x16xf32> to vector<8x16xf32>
    %76 = vector.shape_cast %73 : vector<8x16xf32> to vector<1x8x16xf32>
    tpu.vector_store %arg4[%c0_75, %c0_76, %c16_77], %76 {strides = array<i32>} : memref<1x8x256xf32, #tpu.memory_space<vmem>>, vector<1x8x16xf32>,
    %77 = vector.extract_strided_slice %68 {offsets = [0, 44], sizes = [8, 16], strides = [1, 1]} : vector<8x346xf32> to vector<8x16xf32>
    %c0_78 = arith.constant 0 : index
    %c0_79 = arith.constant 0 : index
    %c32_80 = arith.constant 32 : index
    %78 = vector.load %arg4[%c0_78, %c0_79, %c32_80] : memref<1x8x256xf32, #tpu.memory_space<vmem>>, vector<1x8x16xf32>
    %79 = vector.shape_cast %78 : vector<1x8x16xf32> to vector<8x16xf32>
    %80 = vector.shape_cast %77 : vector<8x16xf32> to vector<1x8x16xf32>
    tpu.vector_store %arg4[%c0_78, %c0_79, %c32_80], %80 {strides = array<i32>} : memref<1x8x256xf32, #tpu.memory_space<vmem>>, vector<1x8x16xf32>,
    %81 = vector.extract_strided_slice %68 {offsets = [0, 66], sizes = [8, 16], strides = [1, 1]} : vector<8x346xf32> to vector<8x16xf32>
    %c0_81 = arith.constant 0 : index
    %c0_82 = arith.constant 0 : index
    %c48_83 = arith.constant 48 : index
    %82 = vector.load %arg4[%c0_81, %c0_82, %c48_83] : memref<1x8x256xf32, #tpu.memory_space<vmem>>, vector<1x8x16xf32>
    %83 = vector.shape_cast %82 : vector<1x8x16xf32> to vector<8x16xf32>
    %84 = vector.shape_cast %81 : vector<8x16xf32> to vector<1x8x16xf32>
    tpu.vector_store %arg4[%c0_81, %c0_82, %c48_83], %84 {strides = array<i32>} : memref<1x8x256xf32, #tpu.memory_space<vmem>>, vector<1x8x16xf32>,
    %85 = vector.extract_strided_slice %68 {offsets = [0, 88], sizes = [8, 16], strides = [1, 1]} : vector<8x346xf32> to vector<8x16xf32>
    %c0_84 = arith.constant 0 : index
    %c0_85 = arith.constant 0 : index
    %c64_86 = arith.constant 64 : index
    %86 = vector.load %arg4[%c0_84, %c0_85, %c64_86] : memref<1x8x256xf32, #tpu.memory_space<vmem>>, vector<1x8x16xf32>
    %87 = vector.shape_cast %86 : vector<1x8x16xf32> to vector<8x16xf32>
    %88 = vector.shape_cast %85 : vector<8x16xf32> to vector<1x8x16xf32>
    tpu.vector_store %arg4[%c0_84, %c0_85, %c64_86], %88 {strides = array<i32>} : memref<1x8x256xf32, #tpu.memory_space<vmem>>, vector<1x8x16xf32>,
    %89 = vector.extract_strided_slice %68 {offsets = [0, 110], sizes = [8, 16], strides = [1, 1]} : vector<8x346xf32> to vector<8x16xf32>
    %c0_87 = arith.constant 0 : index
    %c0_88 = arith.constant 0 : index
    %c80_89 = arith.constant 80 : index
    %90 = vector.load %arg4[%c0_87, %c0_88, %c80_89] : memref<1x8x256xf32, #tpu.memory_space<vmem>>, vector<1x8x16xf32>
    %91 = vector.shape_cast %90 : vector<1x8x16xf32> to vector<8x16xf32>
    %92 = vector.shape_cast %89 : vector<8x16xf32> to vector<1x8x16xf32>
    tpu.vector_store %arg4[%c0_87, %c0_88, %c80_89], %92 {strides = array<i32>} : memref<1x8x256xf32, #tpu.memory_space<vmem>>, vector<1x8x16xf32>,
    %93 = vector.extract_strided_slice %68 {offsets = [0, 132], sizes = [8, 16], strides = [1, 1]} : vector<8x346xf32> to vector<8x16xf32>
    %c0_90 = arith.constant 0 : index
    %c0_91 = arith.constant 0 : index
    %c96_92 = arith.constant 96 : index
    %94 = vector.load %arg4[%c0_90, %c0_91, %c96_92] : memref<1x8x256xf32, #tpu.memory_space<vmem>>, vector<1x8x16xf32>
    %95 = vector.shape_cast %94 : vector<1x8x16xf32> to vector<8x16xf32>
    %96 = vector.shape_cast %93 : vector<8x16xf32> to vector<1x8x16xf32>
    tpu.vector_store %arg4[%c0_90, %c0_91, %c96_92], %96 {strides = array<i32>} : memref<1x8x256xf32, #tpu.memory_space<vmem>>, vector<1x8x16xf32>,
    %97 = vector.extract_strided_slice %68 {offsets = [0, 154], sizes = [8, 16], strides = [1, 1]} : vector<8x346xf32> to vector<8x16xf32>
    %c0_93 = arith.constant 0 : index
    %c0_94 = arith.constant 0 : index
    %c112_95 = arith.constant 112 : index
    %98 = vector.load %arg4[%c0_93, %c0_94, %c112_95] : memref<1x8x256xf32, #tpu.memory_space<vmem>>, vector<1x8x16xf32>
    %99 = vector.shape_cast %98 : vector<1x8x16xf32> to vector<8x16xf32>
    %100 = vector.shape_cast %97 : vector<8x16xf32> to vector<1x8x16xf32>
    tpu.vector_store %arg4[%c0_93, %c0_94, %c112_95], %100 {strides = array<i32>} : memref<1x8x256xf32, #tpu.memory_space<vmem>>, vector<1x8x16xf32>,
    %101 = vector.extract_strided_slice %68 {offsets = [0, 176], sizes = [8, 16], strides = [1, 1]} : vector<8x346xf32> to vector<8x16xf32>
    %c0_96 = arith.constant 0 : index
    %c0_97 = arith.constant 0 : index
    %c128_98 = arith.constant 128 : index
    %102 = vector.load %arg4[%c0_96, %c0_97, %c128_98] : memref<1x8x256xf32, #tpu.memory_space<vmem>>, vector<1x8x16xf32>
    %103 = vector.shape_cast %102 : vector<1x8x16xf32> to vector<8x16xf32>
    %104 = vector.shape_cast %101 : vector<8x16xf32> to vector<1x8x16xf32>
    tpu.vector_store %arg4[%c0_96, %c0_97, %c128_98], %104 {strides = array<i32>} : memref<1x8x256xf32, #tpu.memory_space<vmem>>, vector<1x8x16xf32>,
    %105 = vector.extract_strided_slice %68 {offsets = [0, 198], sizes = [8, 16], strides = [1, 1]} : vector<8x346xf32> to vector<8x16xf32>
    %c0_99 = arith.constant 0 : index
    %c0_100 = arith.constant 0 : index
    %c144_101 = arith.constant 144 : index
    %106 = vector.load %arg4[%c0_99, %c0_100, %c144_101] : memref<1x8x256xf32, #tpu.memory_space<vmem>>, vector<1x8x16xf32>
    %107 = vector.shape_cast %106 : vector<1x8x16xf32> to vector<8x16xf32>
    %108 = vector.shape_cast %105 : vector<8x16xf32> to vector<1x8x16xf32>
    tpu.vector_store %arg4[%c0_99, %c0_100, %c144_101], %108 {strides = array<i32>} : memref<1x8x256xf32, #tpu.memory_space<vmem>>, vector<1x8x16xf32>,
    %109 = vector.extract_strided_slice %68 {offsets = [0, 220], sizes = [8, 16], strides = [1, 1]} : vector<8x346xf32> to vector<8x16xf32>
    %c0_102 = arith.constant 0 : index
    %c0_103 = arith.constant 0 : index
    %c160_104 = arith.constant 160 : index
    %110 = vector.load %arg4[%c0_102, %c0_103, %c160_104] : memref<1x8x256xf32, #tpu.memory_space<vmem>>, vector<1x8x16xf32>
    %111 = vector.shape_cast %110 : vector<1x8x16xf32> to vector<8x16xf32>
    %112 = vector.shape_cast %109 : vector<8x16xf32> to vector<1x8x16xf32>
    tpu.vector_store %arg4[%c0_102, %c0_103, %c160_104], %112 {strides = array<i32>} : memref<1x8x256xf32, #tpu.memory_space<vmem>>, vector<1x8x16xf32>,
    %113 = vector.extract_strided_slice %68 {offsets = [0, 242], sizes = [8, 16], strides = [1, 1]} : vector<8x346xf32> to vector<8x16xf32>
    %c0_105 = arith.constant 0 : index
    %c0_106 = arith.constant 0 : index
    %c176_107 = arith.constant 176 : index
    %114 = vector.load %arg4[%c0_105, %c0_106, %c176_107] : memref<1x8x256xf32, #tpu.memory_space<vmem>>, vector<1x8x16xf32>
    %115 = vector.shape_cast %114 : vector<1x8x16xf32> to vector<8x16xf32>
    %116 = vector.shape_cast %113 : vector<8x16xf32> to vector<1x8x16xf32>
    tpu.vector_store %arg4[%c0_105, %c0_106, %c176_107], %116 {strides = array<i32>} : memref<1x8x256xf32, #tpu.memory_space<vmem>>, vector<1x8x16xf32>,
    %117 = vector.extract_strided_slice %68 {offsets = [0, 264], sizes = [8, 16], strides = [1, 1]} : vector<8x346xf32> to vector<8x16xf32>
    %c0_108 = arith.constant 0 : index
    %c0_109 = arith.constant 0 : index
    %c192_110 = arith.constant 192 : index
    %118 = vector.load %arg4[%c0_108, %c0_109, %c192_110] : memref<1x8x256xf32, #tpu.memory_space<vmem>>, vector<1x8x16xf32>
    %119 = vector.shape_cast %118 : vector<1x8x16xf32> to vector<8x16xf32>
    %120 = vector.shape_cast %117 : vector<8x16xf32> to vector<1x8x16xf32>
    tpu.vector_store %arg4[%c0_108, %c0_109, %c192_110], %120 {strides = array<i32>} : memref<1x8x256xf32, #tpu.memory_space<vmem>>, vector<1x8x16xf32>,
    %121 = vector.extract_strided_slice %68 {offsets = [0, 286], sizes = [8, 16], strides = [1, 1]} : vector<8x346xf32> to vector<8x16xf32>
    %c0_111 = arith.constant 0 : index
    %c0_112 = arith.constant 0 : index
    %c208_113 = arith.constant 208 : index
    %122 = vector.load %arg4[%c0_111, %c0_112, %c208_113] : memref<1x8x256xf32, #tpu.memory_space<vmem>>, vector<1x8x16xf32>
    %123 = vector.shape_cast %122 : vector<1x8x16xf32> to vector<8x16xf32>
    %124 = vector.shape_cast %121 : vector<8x16xf32> to vector<1x8x16xf32>
    tpu.vector_store %arg4[%c0_111, %c0_112, %c208_113], %124 {strides = array<i32>} : memref<1x8x256xf32, #tpu.memory_space<vmem>>, vector<1x8x16xf32>,
    %125 = vector.extract_strided_slice %68 {offsets = [0, 308], sizes = [8, 16], strides = [1, 1]} : vector<8x346xf32> to vector<8x16xf32>
    %c0_114 = arith.constant 0 : index
    %c0_115 = arith.constant 0 : index
    %c224_116 = arith.constant 224 : index
    %126 = vector.load %arg4[%c0_114, %c0_115, %c224_116] : memref<1x8x256xf32, #tpu.memory_space<vmem>>, vector<1x8x16xf32>
    %127 = vector.shape_cast %126 : vector<1x8x16xf32> to vector<8x16xf32>
    %128 = vector.shape_cast %125 : vector<8x16xf32> to vector<1x8x16xf32>
    tpu.vector_store %arg4[%c0_114, %c0_115, %c224_116], %128 {strides = array<i32>} : memref<1x8x256xf32, #tpu.memory_space<vmem>>, vector<1x8x16xf32>,
    %129 = vector.extract_strided_slice %68 {offsets = [0, 330], sizes = [8, 16], strides = [1, 1]} : vector<8x346xf32> to vector<8x16xf32>
    %c0_117 = arith.constant 0 : index
    %c0_118 = arith.constant 0 : index
    %c240_119 = arith.constant 240 : index
    %130 = vector.load %arg4[%c0_117, %c0_118, %c240_119] : memref<1x8x256xf32, #tpu.memory_space<vmem>>, vector<1x8x16xf32>
    %131 = vector.shape_cast %130 : vector<1x8x16xf32> to vector<8x16xf32>
    %132 = vector.shape_cast %129 : vector<8x16xf32> to vector<1x8x16xf32>
    tpu.vector_store %arg4[%c0_117, %c0_118, %c240_119], %132 {strides = array<i32>} : memref<1x8x256xf32, #tpu.memory_space<vmem>>, vector<1x8x16xf32>,
    return
  }
  func.func @transform_0(%arg0: i32) -> (i32, i32, i32) {
    %c0_i32 = arith.constant 0 : i32
    %c0_i32_0 = arith.constant 0 : i32
    %c0_i32_1 = arith.constant 0 : i32
    return %arg0, %c0_i32, %c0_i32_0 : i32, i32, i32
  }
  func.func @transform_1(%arg0: i32) -> (i32, i32) {
    %c0_i32 = arith.constant 0 : i32
    %c0_i32_0 = arith.constant 0 : i32
    %c0_i32_1 = arith.constant 0 : i32
    return %c0_i32, %c0_i32_0 : i32, i32
  }
  func.func @transform_2(%arg0: i32) -> (i32, i32) {
    %c0_i32 = arith.constant 0 : i32
    %c0_i32_0 = arith.constant 0 : i32
    %c0_i32_1 = arith.constant 0 : i32
    return %c0_i32, %c0_i32_0 : i32, i32
  }
  func.func @transform_3(%arg0: i32) -> (i32, i32, i32) {
    %c0_i32 = arith.constant 0 : i32
    %c0_i32_0 = arith.constant 0 : i32
    %c0_i32_1 = arith.constant 0 : i32
    return %arg0, %c0_i32, %c0_i32_0 : i32, i32, i32
  }
}

</mosaic_0001>

<llo_original>
// kernel: tpu_custom_call.1
$region0: #{tpu_custom_call.1}
  #allocation0 [shape = 'u32[]', space=smem, size = 0x4, offset = 0x4, fixed_abs, tag = 'smem constant byte address 0x4 - core index']
  #allocation1 [shape = 'u32[144,128]{1,0:T(1,128)}', space=vmem, size = 0x12000, scoped, tag = 'internal scratch']
  #allocation2 [shape = 'f32[8,484]{1,0:T(8,128)}', space=vmem, size = 0x4000, scoped, tag = 'scratch operand']
  %s0 = inlined_call_operand.hbm [shape: f32[2,4,256], index: 0, kind: input, shape index: {}]
  %s1 = inlined_call_operand.vmem [shape: f32[8,104], index: 1, kind: input, shape index: {}]
  %s2 = inlined_call_operand.vmem [shape: f32[8,1], index: 2, kind: input, shape index: {}]
  %s3 = inlined_call_operand.hbm [shape: f32[2,8,256], index: 3, kind: output, shape index: {}]
  %s4 = sld [smem:[#allocation0]]
  $region49: #{tpu_custom_call.1} parent=0
    _
  %s6 = ssub.s32 1, %s4
  %s7 = scalar_select 0, %s6, %s4
  $region1: #{tpu_custom_call.1} parent=0
    #allocation3 [shape = 'u8[8192]{0}', space=vmem, size = 0x2000, scoped, tag = 'input window, operand 0']
    #allocation4 [shape = 's32[2]{0}', space=sflag, size = 0x8, scoped, tag = 'scoped memory for tpu_custom_call.1']
    #allocation5 [shape = 's32[2]{0}', space=sflag, size = 0x8, scoped, tag = 'scoped memory for tpu_custom_call.1']
    #allocation6 [shape = 'u8[16384]{0}', space=vmem, size = 0x4000, scoped, tag = 'output window, operand 0']
    %8 = vsyncpa [#allocation4], 0
    %s9 = scalar_lea.sflag [#allocation4], 1
    %10 = vsyncpa %s9, 0
    %11 = vsyncpa [#allocation5], 0
    %s12 = scalar_lea.sflag [#allocation5], 1
    %13 = vsyncpa %s12, 0
    loop: start=0, step=1, limit=4
    $region2: #{tpu_custom_call.1} parent=1 // loop_pre_header
      _
    $region3: #{tpu_custom_call.1} parent=1 // loop_header
      %s15 = sphi 0, %s19
      %p16 = scmp.ge.s32.totalorder %s15, 4
      %s25 = sphi 0, %s27
      %s28 = sphi 0, %s25
      %s29 = sphi 0, %s28
      %s45 = sphi 0, %s29
      %s49 = sphi 0, %s49
      %s51 = sphi 0, %s49
      %s52 = sphi 0, %s51
      %s66 = sphi 0, %s52
      %s70 = sphi 0, %s70
      %s72 = sphi 0, %s70
      %s73 = sphi 0, %s72
      %s87 = sphi 0, %s73
      %s93 = sphi 0, %s95
      %s96 = sphi 0, %s93
      %s97 = sphi 0, %s96
      %s113 = sphi 0, %s97
    $region4: #{tpu_custom_call.1} parent=1 // loop_header_branch
      %18 = sbr.rel (%p16) target = $region8
    $region5: #{tpu_custom_call.1} parent=1 // loop_body
      %s20 = ssub.s32 %s15, 1
      %s21 = ssub.s32 %s15, 2
      %s22 = sadd.s32 %s15, 1
      %s23 = ssub.s32 %s15, %s22
      %p24 = scmp.eq.s32.totalorder %s23, 0
      %s26 = sadd.s32 %s25, 1
      %s27 = scalar_select %p24, %s25, %s26
      %p30 = pneg %p24
      %p31 = scmp.eq.s32.totalorder %s15, 1
      %p32 = por %p30, %p31
      %p33 = scmp.ne.s32.totalorder %s25, %s28
      %p34 = scmp.eq.s32.totalorder %s15, 0
      %p35 = por %p33, %p34
      %p36 = scmp.ne.s32.totalorder %s25, %s28
      %p37 = scmp.eq.s32.totalorder %s20, 1
      %p38 = por %p36, %p37
      %p39 = scmp.ne.s32.totalorder %s28, %s29
      %p40 = scmp.eq.s32.totalorder %s20, 0
      %p41 = por %p39, %p40
      %p42 = scmp.ne.s32.totalorder %s28, %s29
      %p43 = scmp.eq.s32.totalorder %s21, 1
      %p44 = por %p42, %p43
      %p46 = scmp.ne.s32.totalorder %s29, %s45
      %p47 = scmp.eq.s32.totalorder %s21, 0
      %p48 = por %p46, %p47
      %s50 = sadd.s32 %s49, 1
      %p53 = scmp.eq.s32.totalorder %s15, 1
      %p54 = scmp.ne.s32.totalorder %s49, %s51
      %p55 = scmp.eq.s32.totalorder %s15, 0
      %p56 = por %p54, %p55
      %p57 = scmp.ne.s32.totalorder %s49, %s51
      %p58 = scmp.eq.s32.totalorder %s20, 1
      %p59 = por %p57, %p58
      %p60 = scmp.ne.s32.totalorder %s51, %s52
      %p61 = scmp.eq.s32.totalorder %s20, 0
      %p62 = por %p60, %p61
      %p63 = scmp.ne.s32.totalorder %s51, %s52
      %p64 = scmp.eq.s32.totalorder %s21, 1
      %p65 = por %p63, %p64
      %p67 = scmp.ne.s32.totalorder %s52, %s66
      %p68 = scmp.eq.s32.totalorder %s21, 0
      %p69 = por %p67, %p68
      %s71 = sadd.s32 %s70, 1
      %p74 = scmp.eq.s32.totalorder %s15, 1
      %p75 = scmp.ne.s32.totalorder %s70, %s72
      %p76 = scmp.eq.s32.totalorder %s15, 0
      %p77 = por %p75, %p76
      %p78 = scmp.ne.s32.totalorder %s70, %s72
      %p79 = scmp.eq.s32.totalorder %s20, 1
      %p80 = por %p78, %p79
      %p81 = scmp.ne.s32.totalorder %s72, %s73
      %p82 = scmp.eq.s32.totalorder %s20, 0
      %p83 = por %p81, %p82
      %p84 = scmp.ne.s32.totalorder %s72, %s73
      %p85 = scmp.eq.s32.totalorder %s21, 1
      %p86 = por %p84, %p85
      %p88 = scmp.ne.s32.totalorder %s73, %s87
      %p89 = scmp.eq.s32.totalorder %s21, 0
      %p90 = por %p88, %p89
      %s91 = ssub.s32 %s15, %s22
      %p92 = scmp.eq.s32.totalorder %s91, 0
      %s94 = sadd.s32 %s93, 1
      %s95 = scalar_select %p92, %s93, %s94
      %p98 = pneg %p92
      %p99 = scmp.eq.s32.totalorder %s15, 1
      %p100 = por %p98, %p99
      %p101 = scmp.ne.s32.totalorder %s93, %s96
      %p102 = scmp.eq.s32.totalorder %s15, 0
      %p103 = por %p101, %p102
      %p104 = scmp.ne.s32.totalorder %s93, %s96
      %p105 = scmp.eq.s32.totalorder %s20, 1
      %p106 = por %p104, %p105
      %p107 = scmp.ne.s32.totalorder %s96, %s97
      %p108 = scmp.eq.s32.totalorder %s20, 0
      %p109 = por %p107, %p108
      %p110 = scmp.ne.s32.totalorder %s96, %s97
      %p111 = scmp.eq.s32.totalorder %s21, 1
      %p112 = por %p110, %p111
      %p114 = scmp.ne.s32.totalorder %s97, %s113
      %p115 = scmp.eq.s32.totalorder %s21, 0
      %p116 = por %p114, %p115
      %p117 = scmp.le.s32.totalorder 1, %s15
      %p118 = scmp.lt.s32.totalorder %s15, 3
      %p119 = pnand %p117, %p118
      %p120 = pneg %p119
      // Predicated region
      $region9: #{tpu_custom_call.1} parent=5 // pred_check
        _
      $region10: #{tpu_custom_call.1} parent=5 // pred_check_branch
        %122 = sbr.rel (%p119) target = $region12
      $region11: #{tpu_custom_call.1} parent=5 // pred_region
        %s123 = ssub.s32 %s15, 1
        // Predicated region
        $region13: #{tpu_custom_call.1} parent=11 // pred_check
          %p124 = pneg %p62
        $region14: #{tpu_custom_call.1} parent=11 // pred_check_branch
          %126 = sbr.rel (%p124) target = $region16
        $region15: #{tpu_custom_call.1} parent=11 // pred_region
          _
        $region16: #{tpu_custom_call.1} parent=11 // pred_fallthru
          _
        // Predicated region
        $region17: #{tpu_custom_call.1} parent=11 // pred_check
          %p127 = pneg %p83
        $region18: #{tpu_custom_call.1} parent=11 // pred_check_branch
          %129 = sbr.rel (%p127) target = $region20
        $region19: #{tpu_custom_call.1} parent=11 // pred_region
          _
        $region20: #{tpu_custom_call.1} parent=11 // pred_fallthru
          _
      $region12: #{tpu_custom_call.1} parent=5 // pred_fallthru
        _
      %p130 = scmp.lt.s32.totalorder %s15, 2
      // Predicated region
      $region21: #{tpu_custom_call.1} parent=5 // pred_check
        %p131 = pneg %p130
      $region22: #{tpu_custom_call.1} parent=5 // pred_check_branch
        %133 = sbr.rel (%p131) target = $region24
      $region23: #{tpu_custom_call.1} parent=5 // pred_region
        // Predicated region
        $region25: #{tpu_custom_call.1} parent=23 // pred_check
          %p134 = pneg %p35
        $region26: #{tpu_custom_call.1} parent=23 // pred_check_branch
          %136 = sbr.rel (%p134) target = $region28
        $region27: #{tpu_custom_call.1} parent=23 // pred_region
          %s137 = sand.u32 %s25, 1
          %s138 = scalar_lea.sflag [#allocation4], %s137
          %s139 = sand.u32 %s25, 1
          %s140 = smul.addr %s139, 8
          %s141 = scalar_lea.vmem [#allocation3], %s140
          %s143 = ssub.s32 128, 128
          %144 = vsyncadd %s138, %s143
          %s145 = smul.addr %s15, 2
          %s146 = smul.addr %s145, 64
          %s147 = scalar_lea.hbm %s0, %s146
          %s149 = sshll.u32 %s141, 4
          %s150 = int_to_ptr.vmem [resolvable:$true] %s149
          %152 = dma.hbm_to_vmem [thread:$0]  %s147, 128, %s150, %s138
        $region28: #{tpu_custom_call.1} parent=23 // pred_fallthru
          _
      $region24: #{tpu_custom_call.1} parent=5 // pred_fallthru
        _
      %p153 = scmp.le.s32.totalorder 1, %s15
      %p154 = scmp.lt.s32.totalorder %s15, 3
      %p155 = pnand %p153, %p154
      %p156 = pneg %p155
      // Predicated region
      $region29: #{tpu_custom_call.1} parent=5 // pred_check
        _
      $region30: #{tpu_custom_call.1} parent=5 // pred_check_branch
        %158 = sbr.rel (%p155) target = $region32
      $region31: #{tpu_custom_call.1} parent=5 // pred_region
        %s159 = ssub.s32 %s15, 1
        %s160 = sand.u32 %s28, 1
        %s161 = scalar_lea.sflag [#allocation4], %s160
        %s162 = sand.u32 %s28, 1
        %s163 = smul.addr %s162, 8
        %s164 = scalar_lea.vmem [#allocation3], %s163
        // Predicated region
        $region33: #{tpu_custom_call.1} parent=31 // pred_check
          %p165 = pneg %p41
        $region34: #{tpu_custom_call.1} parent=31 // pred_check_branch
          %167 = sbr.rel (%p165) target = $region36
        $region35: #{tpu_custom_call.1} parent=31 // pred_region
          %168 = dma.done %s161, 128
        $region36: #{tpu_custom_call.1} parent=31 // pred_fallthru
          _
        %s169 = sand.u32 %s28, 1
        %s170 = scalar_lea.sflag [#allocation4], %s169
        %s171 = sand.u32 %s28, 1
        %s172 = smul.addr %s171, 8
        %s173 = scalar_lea.vmem [#allocation3], %s172
        %p174 = pneg %p41
        %p175 = pneg %p38
        %p176 = pneg %p62
        %p177 = pneg %p59
        %p178 = pneg %p83
        %p179 = pneg %p80
        %p180 = pneg %p109
        %p181 = pneg %p106
        %s182 = sand.u32 %s96, 1
        %s183 = scalar_lea.sflag [#allocation5], %s182
        %s184 = sand.u32 %s96, 1
        %s185 = smul.addr %s184, 16
        %s186 = scalar_lea.vmem [#allocation6], %s185
        %187 = vst [vmem:[#allocation2] sm:$0xff] 0.0
        %188 = vst [vmem:[#allocation2 + $0x8] sm:$0xff] 0.0
        %189 = vst [vmem:[#allocation2 + $0x10] sm:$0xff] 0.0
        %vm190 = vcmask 818176
        %191 = vst.msk [vmem:[#allocation2 + $0x18] sm:$0xff] %vm190, 0.0
        %v192 = vld [vmem:[%s164] sm:$0xf]
        %194 = vrot.lane.b32.xlu0 %v192, 69
        %v195 = vpop.permute.xlu0 %194
        %vm197 = vcmask 691752
        %198 = vst.msk [vmem:[#allocation2] sm:$0xf] %vm197, %v195
        %v199 = vld [vmem:[%s164] sm:$0xf]
        %201 = vrot.lane.b32.xlu0 %v199, 75
        %v202 = vpop.permute.xlu0 %201
        %vm204 = vcmask 872152
        %205 = vst.msk [vmem:[#allocation2] sm:$0xf] %vm204, %v202
        %v206 = vld [vmem:[%s164] sm:$0xf]
        %208 = vrot.lane.b32.xlu0 %v206, 81
        %v209 = vpop.permute.xlu0 %208
        %vm211 = vcmask 1044360
        %212 = vst.msk [vmem:[#allocation2] sm:$0xf] %vm211, %v209
        %vm213 = vcmask 3072
        %214 = vst.msk [vmem:[#allocation2 + $0x8] sm:$0xf] %vm213, %v209
        %v215 = vld [vmem:[%s164] sm:$0xf]
        %217 = vrot.lane.b32.xlu0 %v215, 87
        %v218 = vpop.permute.xlu0 %217
        %vm220 = vcmask 183352
        %221 = vst.msk [vmem:[#allocation2 + $0x8] sm:$0xf] %vm220, %v218
        %v222 = vld [vmem:[%s164] sm:$0xf]
        %224 = vrot.lane.b32.xlu0 %v222, 93
        %v225 = vpop.permute.xlu0 %224
        %vm227 = vcmask 363752
        %228 = vst.msk [vmem:[#allocation2 + $0x8] sm:$0xf] %vm227, %v225
        %v229 = vld [vmem:[%s164] sm:$0xf]
        %231 = vrot.lane.b32.xlu0 %v229, 99
        %v232 = vpop.permute.xlu0 %231
        %vm234 = vcmask 544152
        %235 = vst.msk [vmem:[#allocation2 + $0x8] sm:$0xf] %vm234, %v232
        %v236 = vld [vmem:[%s164] sm:$0xf]
        %238 = vrot.lane.b32.xlu0 %v236, 105
        %v239 = vpop.permute.xlu0 %238
        %vm241 = vcmask 724552
        %242 = vst.msk [vmem:[#allocation2 + $0x8] sm:$0xf] %vm241, %v239
        %v243 = vld [vmem:[%s164] sm:$0xf]
        %245 = vrot.lane.b32.xlu0 %v243, 111
        %v246 = vpop.permute.xlu0 %245
        %vm248 = vcmask 904952
        %249 = vst.msk [vmem:[#allocation2 + $0x8] sm:$0xf] %vm248, %v246
        %v250 = vld [vmem:[%s164 + $0x4] sm:$0xf]
        %252 = vrot.lane.b32.xlu0 %v250, 117
        %v253 = vpop.permute.xlu0 %252
        %vm255 = vcmask 1044392
        %256 = vst.msk [vmem:[#allocation2 + $0x8] sm:$0xf] %vm255, %v253
        %vm257 = vcmask 35840
        %258 = vst.msk [vmem:[#allocation2 + $0x10] sm:$0xf] %vm257, %v253
        %v259 = vld [vmem:[%s164 + $0x4] sm:$0xf]
        %261 = vrot.lane.b32.xlu0 %v259, 123
        %v262 = vpop.permute.xlu0 %261
        %vm264 = vcmask 216152
        %265 = vst.msk [vmem:[#allocation2 + $0x10] sm:$0xf] %vm264, %v262
        %v266 = vld [vmem:[%s164 + $0x4] sm:$0xf]
        %268 = vrot.lane.b32.xlu0 %v266, 1
        %v269 = vpop.permute.xlu0 %268
        %vm271 = vcmask 396552
        %272 = vst.msk [vmem:[#allocation2 + $0x10] sm:$0xf] %vm271, %v269
        %v273 = vld [vmem:[%s164 + $0x4] sm:$0xf]
        %275 = vrot.lane.b32.xlu0 %v273, 7
        %v276 = vpop.permute.xlu0 %275
        %vm278 = vcmask 576952
        %279 = vst.msk [vmem:[#allocation2 + $0x10] sm:$0xf] %vm278, %v276
        %v280 = vld [vmem:[%s164 + $0x4] sm:$0xf]
        %282 = vrot.lane.b32.xlu0 %v280, 13
        %v283 = vpop.permute.xlu0 %282
        %vm285 = vcmask 757352
        %286 = vst.msk [vmem:[#allocation2 + $0x10] sm:$0xf] %vm285, %v283
        %v287 = vld [vmem:[%s164 + $0x4] sm:$0xf]
        %289 = vrot.lane.b32.xlu0 %v287, 19
        %v290 = vpop.permute.xlu0 %289
        %vm292 = vcmask 937752
        %293 = vst.msk [vmem:[#allocation2 + $0x10] sm:$0xf] %vm292, %v290
        %v294 = vld [vmem:[%s164 + $0x4] sm:$0xf]
        %296 = vrot.lane.b32.xlu0 %v294, 25
        %v297 = vpop.permute.xlu0 %296
        %vm299 = vcmask 1044424
        %300 = vst.msk [vmem:[#allocation2 + $0x10] sm:$0xf] %vm299, %v297
        %vm301 = vcmask 68608
        %302 = vst.msk [vmem:[#allocation2 + $0x18] sm:$0xf] %vm301, %v297
        %v303 = vld [vmem:[%s164 + $0x4] sm:$0xf]
        %305 = vrot.lane.b32.xlu0 %v303, 31
        %v306 = vpop.permute.xlu0 %305
        %vm308 = vcmask 248952
        %309 = vst.msk [vmem:[#allocation2 + $0x18] sm:$0xf] %vm308, %v306
        %v310 = vld [vmem:[#allocation2] sm:$0xff]
        %v311 = vld [vmem:[#allocation2 + $0x8] sm:$0xff]
        %v312 = vld [vmem:[#allocation2 + $0x10] sm:$0xff]
        %v313 = vld [vmem:[#allocation2 + $0x18] sm:$0xff]
        %318 = vrot.lane.b32.xlu0 %v310, 127
        %v319 = vpop.permute.xlu0 %318
        %320 = vrot.lane.b32.xlu0 %v311, 127
        %v321 = vpop.permute.xlu0 %320
        %322 = vrot.lane.b32.xlu0 %v312, 127
        %v323 = vpop.permute.xlu0 %322
        %324 = vrot.lane.b32.xlu0 %v313, 127
        %v325 = vpop.permute.xlu0 %324
        %vm326 = vcmask 1039360
        %v327 = vsel %vm326, %v319, %v321
        %v328 = vsel %vm326, %v321, %v323
        %v329 = vsel %vm326, %v323, %v325
        %330 = vrot.lane.b32.xlu0 %v310, 126
        %v331 = vpop.permute.xlu0 %330
        %332 = vrot.lane.b32.xlu0 %v311, 126
        %v333 = vpop.permute.xlu0 %332
        %334 = vrot.lane.b32.xlu0 %v312, 126
        %v335 = vpop.permute.xlu0 %334
        %336 = vrot.lane.b32.xlu0 %v313, 126
        %v337 = vpop.permute.xlu0 %336
        %vm338 = vcmask 1031168
        %v339 = vsel %vm338, %v331, %v333
        %v340 = vsel %vm338, %v333, %v335
        %v341 = vsel %vm338, %v335, %v337
        %342 = vrot.lane.b32.xlu0 %v310, 21
        %v343 = vpop.permute.xlu0 %342
        %344 = vrot.lane.b32.xlu0 %v311, 21
        %v345 = vpop.permute.xlu0 %344
        %346 = vrot.lane.b32.xlu0 %v312, 21
        %v347 = vpop.permute.xlu0 %346
        %348 = vrot.lane.b32.xlu0 %v313, 21
        %v349 = vpop.permute.xlu0 %348
        %vm350 = vcmask 171008
        %v351 = vsel %vm350, %v343, %v345
        %v352 = vsel %vm350, %v345, %v347
        %v353 = vsel %vm350, %v347, %v349
        %354 = vrot.lane.b32.xlu0 %v310, 105
        %v355 = vpop.permute.xlu0 %354
        %356 = vrot.lane.b32.xlu0 %v311, 105
        %v357 = vpop.permute.xlu0 %356
        %358 = vrot.lane.b32.xlu0 %v312, 105
        %v359 = vpop.permute.xlu0 %358
        %360 = vrot.lane.b32.xlu0 %v313, 105
        %v361 = vpop.permute.xlu0 %360
        %vm362 = vcmask 859136
        %v363 = vsel %vm362, %v355, %v357
        %v364 = vsel %vm362, %v357, %v359
        %v365 = vsel %vm362, %v359, %v361
        %366 = vrot.lane.b32.xlu0 %v310, 1
        %v367 = vpop.permute.xlu0 %366
        %368 = vrot.lane.b32.xlu0 %v311, 1
        %v369 = vpop.permute.xlu0 %368
        %370 = vrot.lane.b32.xlu0 %v312, 1
        %v371 = vpop.permute.xlu0 %370
        %372 = vrot.lane.b32.xlu0 %v313, 1
        %v373 = vpop.permute.xlu0 %372
        %vm374 = vcmask 7168
        %v375 = vsel %vm374, %v367, %v369
        %v376 = vsel %vm374, %v369, %v371
        %v377 = vsel %vm374, %v371, %v373
        %378 = vrot.lane.b32.xlu0 %v310, 125
        %v379 = vpop.permute.xlu0 %378
        %380 = vrot.lane.b32.xlu0 %v311, 125
        %v381 = vpop.permute.xlu0 %380
        %382 = vrot.lane.b32.xlu0 %v312, 125
        %v383 = vpop.permute.xlu0 %382
        %384 = vrot.lane.b32.xlu0 %v313, 125
        %v385 = vpop.permute.xlu0 %384
        %vm386 = vcmask 1022976
        %v387 = vsel %vm386, %v379, %v381
        %v388 = vsel %vm386, %v381, %v383
        %v389 = vsel %vm386, %v383, %v385
        %390 = vrot.lane.b32.xlu0 %v310, 43
        %v391 = vpop.permute.xlu0 %390
        %392 = vrot.lane.b32.xlu0 %v311, 43
        %v393 = vpop.permute.xlu0 %392
        %394 = vrot.lane.b32.xlu0 %v312, 43
        %v395 = vpop.permute.xlu0 %394
        %vm396 = vcmask 351232
        %v397 = vsel %vm396, %v391, %v393
        %v398 = vsel %vm396, %v393, %v395
        %399 = vrot.lane.b32.xlu0 %v310, 83
        %v400 = vpop.permute.xlu0 %399
        %401 = vrot.lane.b32.xlu0 %v311, 83
        %v402 = vpop.permute.xlu0 %401
        %403 = vrot.lane.b32.xlu0 %v312, 83
        %v404 = vpop.permute.xlu0 %403
        %405 = vrot.lane.b32.xlu0 %v313, 83
        %v406 = vpop.permute.xlu0 %405
        %vm407 = vcmask 678912
        %v408 = vsel %vm407, %v400, %v402
        %v409 = vsel %vm407, %v402, %v404
        %v410 = vsel %vm407, %v404, %v406
        %411 = vrot.lane.b32.xlu0 %v310, 2
        %v412 = vpop.permute.xlu0 %411
        %413 = vrot.lane.b32.xlu0 %v311, 2
        %v414 = vpop.permute.xlu0 %413
        %415 = vrot.lane.b32.xlu0 %v312, 2
        %v416 = vpop.permute.xlu0 %415
        %417 = vrot.lane.b32.xlu0 %v313, 2
        %v418 = vpop.permute.xlu0 %417
        %vm419 = vcmask 15360
        %v420 = vsel %vm419, %v412, %v414
        %v421 = vsel %vm419, %v414, %v416
        %v422 = vsel %vm419, %v416, %v418
        %423 = vrot.lane.b32.xlu0 %v310, 124
        %v424 = vpop.permute.xlu0 %423
        %425 = vrot.lane.b32.xlu0 %v311, 124
        %v426 = vpop.permute.xlu0 %425
        %427 = vrot.lane.b32.xlu0 %v312, 124
        %v428 = vpop.permute.xlu0 %427
        %429 = vrot.lane.b32.xlu0 %v313, 124
        %v430 = vpop.permute.xlu0 %429
        %vm431 = vcmask 1014784
        %v432 = vsel %vm431, %v424, %v426
        %v433 = vsel %vm431, %v426, %v428
        %v434 = vsel %vm431, %v428, %v430
        %435 = vrot.lane.b32.xlu0 %v310, 65
        %v436 = vpop.permute.xlu0 %435
        %437 = vrot.lane.b32.xlu0 %v311, 65
        %v438 = vpop.permute.xlu0 %437
        %439 = vrot.lane.b32.xlu0 %v312, 65
        %v440 = vpop.permute.xlu0 %439
        %vm441 = vcmask 531456
        %v442 = vsel %vm441, %v436, %v438
        %v443 = vsel %vm441, %v438, %v440
        %444 = vrot.lane.b32.xlu0 %v311, 61
        %v445 = vpop.permute.xlu0 %444
        %446 = vrot.lane.b32.xlu0 %v312, 61
        %v447 = vpop.permute.xlu0 %446
        %448 = vrot.lane.b32.xlu0 %v313, 61
        %v449 = vpop.permute.xlu0 %448
        %vm450 = vcmask 498688
        %v451 = vsel %vm450, %v445, %v447
        %v452 = vsel %vm450, %v447, %v449
        %v453 = vld [vmem:[%s1] sm:$0xff]
        %v454 = vld [vmem:[%s2] sm:$0xff]
        %456 = vset.pattern.permute.xlu0 0
        %457 = vperm.xlu0 %456, %v454
        %v458 = vpop.permute.xlu0 %457
        %460 = vrot.lane.b32.xlu0 %v310, 60
        %v461 = vpop.permute.xlu0 %460
        %462 = vrot.lane.b32.xlu0 %v311, 60
        %v463 = vpop.permute.xlu0 %462
        %464 = vrot.lane.b32.xlu0 %v312, 60
        %v465 = vpop.permute.xlu0 %464
        %466 = vrot.lane.b32.xlu0 %v313, 60
        %v467 = vpop.permute.xlu0 %466
        %468 = vrot.lane.b32.xlu0 %v327, 60
        %v469 = vpop.permute.xlu0 %468
        %470 = vrot.lane.b32.xlu0 %v328, 60
        %v471 = vpop.permute.xlu0 %470
        %472 = vrot.lane.b32.xlu0 %v329, 60
        %v473 = vpop.permute.xlu0 %472
        %474 = vrot.lane.b32.xlu0 %v325, 60
        %v475 = vpop.permute.xlu0 %474
        %476 = vrot.lane.b32.xlu0 %v339, 60
        %v477 = vpop.permute.xlu0 %476
        %478 = vrot.lane.b32.xlu0 %v340, 60
        %v479 = vpop.permute.xlu0 %478
        %480 = vrot.lane.b32.xlu0 %v341, 60
        %v481 = vpop.permute.xlu0 %480
        %482 = vrot.lane.b32.xlu0 %v337, 60
        %v483 = vpop.permute.xlu0 %482
        %484 = vrot.lane.b32.xlu0 %v343, 60
        %v485 = vpop.permute.xlu0 %484
        %486 = vrot.lane.b32.xlu0 %v351, 60
        %v487 = vpop.permute.xlu0 %486
        %488 = vrot.lane.b32.xlu0 %v352, 60
        %v489 = vpop.permute.xlu0 %488
        %490 = vrot.lane.b32.xlu0 %v353, 60
        %v491 = vpop.permute.xlu0 %490
        %492 = vrot.lane.b32.xlu0 %v363, 60
        %v493 = vpop.permute.xlu0 %492
        %494 = vrot.lane.b32.xlu0 %v364, 60
        %v495 = vpop.permute.xlu0 %494
        %496 = vrot.lane.b32.xlu0 %v365, 60
        %v497 = vpop.permute.xlu0 %496
        %498 = vrot.lane.b32.xlu0 %v361, 60
        %v499 = vpop.permute.xlu0 %498
        %500 = vrot.lane.b32.xlu0 %v367, 60
        %v501 = vpop.permute.xlu0 %500
        %502 = vrot.lane.b32.xlu0 %v375, 60
        %v503 = vpop.permute.xlu0 %502
        %504 = vrot.lane.b32.xlu0 %v376, 60
        %v505 = vpop.permute.xlu0 %504
        %506 = vrot.lane.b32.xlu0 %v377, 60
        %v507 = vpop.permute.xlu0 %506
        %508 = vrot.lane.b32.xlu0 %v387, 60
        %v509 = vpop.permute.xlu0 %508
        %510 = vrot.lane.b32.xlu0 %v388, 60
        %v511 = vpop.permute.xlu0 %510
        %512 = vrot.lane.b32.xlu0 %v389, 60
        %v513 = vpop.permute.xlu0 %512
        %514 = vrot.lane.b32.xlu0 %v385, 60
        %v515 = vpop.permute.xlu0 %514
        %516 = vrot.lane.b32.xlu0 %v391, 60
        %v517 = vpop.permute.xlu0 %516
        %518 = vrot.lane.b32.xlu0 %v397, 60
        %v519 = vpop.permute.xlu0 %518
        %520 = vrot.lane.b32.xlu0 %v398, 60
        %v521 = vpop.permute.xlu0 %520
        %522 = vrot.lane.b32.xlu0 %v395, 60
        %v523 = vpop.permute.xlu0 %522
        %524 = vrot.lane.b32.xlu0 %v408, 60
        %v525 = vpop.permute.xlu0 %524
        %526 = vrot.lane.b32.xlu0 %v409, 60
        %v527 = vpop.permute.xlu0 %526
        %528 = vrot.lane.b32.xlu0 %v410, 60
        %v529 = vpop.permute.xlu0 %528
        %530 = vrot.lane.b32.xlu0 %v406, 60
        %v531 = vpop.permute.xlu0 %530
        %532 = vrot.lane.b32.xlu0 %v412, 60
        %v533 = vpop.permute.xlu0 %532
        %534 = vrot.lane.b32.xlu0 %v420, 60
        %v535 = vpop.permute.xlu0 %534
        %536 = vrot.lane.b32.xlu0 %v421, 60
        %v537 = vpop.permute.xlu0 %536
        %538 = vrot.lane.b32.xlu0 %v422, 60
        %v539 = vpop.permute.xlu0 %538
        %540 = vrot.lane.b32.xlu0 %v432, 60
        %v541 = vpop.permute.xlu0 %540
        %542 = vrot.lane.b32.xlu0 %v433, 60
        %v543 = vpop.permute.xlu0 %542
        %544 = vrot.lane.b32.xlu0 %v434, 60
        %v545 = vpop.permute.xlu0 %544
        %546 = vrot.lane.b32.xlu0 %v430, 60
        %v547 = vpop.permute.xlu0 %546
        %548 = vrot.lane.b32.xlu0 %v436, 60
        %v549 = vpop.permute.xlu0 %548
        %550 = vrot.lane.b32.xlu0 %v442, 60
        %v551 = vpop.permute.xlu0 %550
        %552 = vrot.lane.b32.xlu0 %v443, 60
        %v553 = vpop.permute.xlu0 %552
        %554 = vrot.lane.b32.xlu0 %v440, 60
        %v555 = vpop.permute.xlu0 %554
        %556 = vrot.lane.b32.xlu0 %v445, 60
        %v557 = vpop.permute.xlu0 %556
        %558 = vrot.lane.b32.xlu0 %v451, 60
        %v559 = vpop.permute.xlu0 %558
        %560 = vrot.lane.b32.xlu0 %v452, 60
        %v561 = vpop.permute.xlu0 %560
        %562 = vrot.lane.b32.xlu0 %v449, 60
        %v563 = vpop.permute.xlu0 %562
        %vm564 = vcmask 490496
        %v565 = vsel %vm564, %v461, %v463
        %v566 = vsel %vm564, %v463, %v465
        %v567 = vsel %vm564, %v465, %v467
        %v568 = vsel %vm564, %v469, %v471
        %v569 = vsel %vm564, %v471, %v473
        %v570 = vsel %vm564, %v473, %v475
        %v571 = vsel %vm564, %v477, %v479
        %v572 = vsel %vm564, %v479, %v481
        %v573 = vsel %vm564, %v481, %v483
        %v574 = vsel %vm564, %v485, %v487
        %v575 = vsel %vm564, %v487, %v489
        %v576 = vsel %vm564, %v489, %v491
        %v577 = vsel %vm564, %v493, %v495
        %v578 = vsel %vm564, %v495, %v497
        %v579 = vsel %vm564, %v497, %v499
        %v580 = vsel %vm564, %v501, %v503
        %v581 = vsel %vm564, %v503, %v505
        %v582 = vsel %vm564, %v505, %v507
        %v583 = vsel %vm564, %v509, %v511
        %v584 = vsel %vm564, %v511, %v513
        %v585 = vsel %vm564, %v513, %v515
        %v586 = vsel %vm564, %v517, %v519
        %v587 = vsel %vm564, %v519, %v521
        %v588 = vsel %vm564, %v521, %v523
        %v589 = vsel %vm564, %v525, %v527
        %v590 = vsel %vm564, %v527, %v529
        %v591 = vsel %vm564, %v529, %v531
        %v592 = vsel %vm564, %v533, %v535
        %v593 = vsel %vm564, %v535, %v537
        %v594 = vsel %vm564, %v537, %v539
        %v595 = vsel %vm564, %v541, %v543
        %v596 = vsel %vm564, %v543, %v545
        %v597 = vsel %vm564, %v545, %v547
        %v598 = vsel %vm564, %v549, %v551
        %v599 = vsel %vm564, %v551, %v553
        %v600 = vsel %vm564, %v553, %v555
        %v601 = vsel %vm564, %v557, %v559
        %v602 = vsel %vm564, %v559, %v561
        %v603 = vsel %vm564, %v561, %v563
        %vm643 = vcmask 850944
        %v645 = vsel %vm643, %v453, 0
        %647 = vmatprep.subr.mxu0 %v566
        %648 = vmatpush1.msra.mxu0 %v565
        %649 = vmatprep.subr.mxu0 %v569
        %650 = vmatpush1.msra.mxu0 %v568
        %651 = vmatprep.subr.mxu0 %v572
        %652 = vmatpush1.msra.mxu0 %v571
        %653 = vmatprep.subr.mxu0 %v575
        %654 = vmatpush1.msra.mxu0 %v574
        %655 = vmatprep.subr.mxu0 %v578
        %656 = vmatpush1.msra.mxu0 %v577
        %657 = vmatprep.subr.mxu0 %v581
        %658 = vmatpush1.msra.mxu0 %v580
        %659 = vmatprep.subr.mxu0 %v584
        %660 = vmatpush1.msra.mxu0 %v583
        %661 = vmatprep.subr.mxu0 %v587
        %662 = vmatpush1.msra.mxu0 %v586
        %663 = vmatprep.subr.mxu0 %v590
        %664 = vmatpush1.msra.mxu0 %v589
        %665 = vmatprep.subr.mxu0 %v593
        %666 = vmatpush1.msra.mxu0 %v592
        %667 = vmatprep.subr.mxu0 %v596
        %668 = vmatpush1.msra.mxu0 %v595
        %669 = vmatprep.subr.mxu0 %v599
        %670 = vmatpush1.msra.mxu0 %v598
        %671 = vmatprep.subr.mxu0 %v602
        %672 = vmatpush1.msra.mxu0 %v601
        %673 = vmatprep.subr.mxu0 0.0
        %674 = vmatpush1.msra.mxu0 0.0
        %675 = vmatprep.subr.mxu0 0.0
        %676 = vmatpush1.msra.mxu0 0.0
        %677 = vmatprep.subr.mxu0 0.0
        %678 = vmatpush1.msra.mxu0 0.0
        %679 = vmatprep.subr.mxu0 0.0
        %680 = vmatpush1.msra.mxu0 0.0
        %681 = vmatprep.subr.mxu0 0.0
        %682 = vmatpush1.msra.mxu0 0.0
        %683 = vmatprep.subr.mxu0 0.0
        %684 = vmatpush1.msra.mxu0 0.0
        %685 = vmatprep.subr.mxu0 0.0
        %686 = vmatpush1.msra.mxu0 0.0
        %687 = vmatprep.subr.mxu0 0.0
        %688 = vmatpush1.msra.mxu0 0.0
        %689 = vmatprep.subr.mxu0 0.0
        %690 = vmatpush1.msra.mxu0 0.0
        %691 = vmatprep.subr.mxu0 0.0
        %692 = vmatpush1.msra.mxu0 0.0
        %693 = vmatprep.subr.mxu0 0.0
        %694 = vmatpush1.msra.mxu0 0.0
        %695 = vmatprep.subr.mxu0 0.0
        %696 = vmatpush1.msra.mxu0 0.0
        %697 = vmatprep.subr.mxu0 0.0
        %698 = vmatpush1.msra.mxu0 0.0
        %699 = vmatprep.subr.mxu0 0.0
        %700 = vmatpush1.msra.mxu0 0.0
        %701 = vmatprep.subr.mxu0 0.0
        %702 = vmatpush1.msra.mxu0 0.0
        %703 = vmatprep.subr.mxu0 0.0
        %704 = vmatpush1.msra.mxu0 0.0
        %705 = vmatprep.subr.mxu0 0.0
        %706 = vmatpush1.msra.mxu0 0.0
        %707 = vmatprep.subr.mxu0 0.0
        %708 = vmatpush1.msra.mxu0 0.0
        %709 = vmatprep.subr.mxu0 0.0
        %710 = vmatpush1.msra.mxu0 0.0
        %711 = vmatprep.mubr.f32.mxu0 0.0
        %712 = vmatmul.mubr.f32.gmra.mrb[0].mxu0 %v645
        %v713 = vpop.f32.mrb[0].mxu0
        %v714 = vadd.f32 %v458, %v713
        %v715 = vpop.f32.mrb[0].mxu0
        %v716 = vadd.f32 %v458, %v715
        %717 = vdwg.mxu0
        %718 = vmatprep.subr.mxu0 0.0
        %719 = vmatpush1.msra.mxu0 %v567
        %720 = vmatprep.subr.mxu0 0.0
        %721 = vmatpush1.msra.mxu0 %v570
        %722 = vmatprep.subr.mxu0 0.0
        %723 = vmatpush1.msra.mxu0 %v573
        %724 = vmatprep.subr.mxu0 0.0
        %725 = vmatpush1.msra.mxu0 %v576
        %726 = vmatprep.subr.mxu0 0.0
        %727 = vmatpush1.msra.mxu0 %v579
        %728 = vmatprep.subr.mxu0 0.0
        %729 = vmatpush1.msra.mxu0 %v582
        %730 = vmatprep.subr.mxu0 0.0
        %731 = vmatpush1.msra.mxu0 %v585
        %732 = vmatprep.subr.mxu0 0.0
        %733 = vmatpush1.msra.mxu0 %v588
        %734 = vmatprep.subr.mxu0 0.0
        %735 = vmatpush1.msra.mxu0 %v591
        %736 = vmatprep.subr.mxu0 0.0
        %737 = vmatpush1.msra.mxu0 %v594
        %738 = vmatprep.subr.mxu0 0.0
        %739 = vmatpush1.msra.mxu0 %v597
        %740 = vmatprep.subr.mxu0 0.0
        %741 = vmatpush1.msra.mxu0 %v600
        %742 = vmatprep.subr.mxu0 0.0
        %743 = vmatpush1.msra.mxu0 %v603
        %744 = vmatprep.subr.mxu0 0.0
        %745 = vmatpush1.msra.mxu0 0.0
        %746 = vmatprep.subr.mxu0 0.0
        %747 = vmatpush1.msra.mxu0 0.0
        %748 = vmatprep.subr.mxu0 0.0
        %749 = vmatpush1.msra.mxu0 0.0
        %750 = vmatprep.subr.mxu0 0.0
        %751 = vmatpush1.msra.mxu0 0.0
        %752 = vmatprep.subr.mxu0 0.0
        %753 = vmatpush1.msra.mxu0 0.0
        %754 = vmatprep.subr.mxu0 0.0
        %755 = vmatpush1.msra.mxu0 0.0
        %756 = vmatprep.subr.mxu0 0.0
        %757 = vmatpush1.msra.mxu0 0.0
        %758 = vmatprep.subr.mxu0 0.0
        %759 = vmatpush1.msra.mxu0 0.0
        %760 = vmatprep.subr.mxu0 0.0
        %761 = vmatpush1.msra.mxu0 0.0
        %762 = vmatprep.subr.mxu0 0.0
        %763 = vmatpush1.msra.mxu0 0.0
        %764 = vmatprep.subr.mxu0 0.0
        %765 = vmatpush1.msra.mxu0 0.0
        %766 = vmatprep.subr.mxu0 0.0
        %767 = vmatpush1.msra.mxu0 0.0
        %768 = vmatprep.subr.mxu0 0.0
        %769 = vmatpush1.msra.mxu0 0.0
        %770 = vmatprep.subr.mxu0 0.0
        %771 = vmatpush1.msra.mxu0 0.0
        %772 = vmatprep.subr.mxu0 0.0
        %773 = vmatpush1.msra.mxu0 0.0
        %774 = vmatprep.subr.mxu0 0.0
        %775 = vmatpush1.msra.mxu0 0.0
        %776 = vmatprep.subr.mxu0 0.0
        %777 = vmatpush1.msra.mxu0 0.0
        %778 = vmatprep.subr.mxu0 0.0
        %779 = vmatpush1.msra.mxu0 0.0
        %780 = vmatprep.subr.mxu0 0.0
        %781 = vmatpush1.msra.mxu0 0.0
        %782 = vmatprep.mubr.f32.mxu0 0.0
        %783 = vmatmul.mubr.f32.gmra.mrb[0].mxu0 %v645
        %v784 = vpop.f32.mrb[0].mxu0
        %v785 = vadd.f32 %v458, %v784
        %v786 = vpop.f32.mrb[0].mxu0
        %787 = vdwg.mxu0
        %vm788 = vcmask 130048
        %789 = vst.msk [vmem:[%s186] sm:$0xff] %vm788, %v714
        %791 = vrot.lane.b32.xlu0 %v714, 122
        %v792 = vpop.permute.xlu0 %791
        %vm794 = vcmask 261248
        %795 = vst.msk [vmem:[%s186] sm:$0xff] %vm794, %v792
        %796 = vrot.lane.b32.xlu0 %v714, 116
        %v797 = vpop.permute.xlu0 %796
        %vm799 = vcmask 392448
        %800 = vst.msk [vmem:[%s186] sm:$0xff] %vm799, %v797
        %801 = vrot.lane.b32.xlu0 %v714, 110
        %v802 = vpop.permute.xlu0 %801
        %vm804 = vcmask 523648
        %805 = vst.msk [vmem:[%s186] sm:$0xff] %vm804, %v802
        %806 = vrot.lane.b32.xlu0 %v714, 104
        %v807 = vpop.permute.xlu0 %806
        %vm809 = vcmask 654848
        %810 = vst.msk [vmem:[%s186] sm:$0xff] %vm809, %v807
        %811 = vrot.lane.b32.xlu0 %v714, 98
        %v812 = vpop.permute.xlu0 %811
        %vm814 = vcmask 786048
        %815 = vst.msk [vmem:[%s186] sm:$0xff] %vm814, %v812
        %817 = vrot.lane.b32.xlu0 %v716, 92
        %v818 = vpop.permute.xlu0 %817
        %vm820 = vcmask 917248
        %821 = vst.msk [vmem:[%s186] sm:$0xff] %vm820, %v818
        %822 = vrot.lane.b32.xlu0 %v716, 86
        %v823 = vpop.permute.xlu0 %822
        %vm825 = vcmask 1048448
        %826 = vst.msk [vmem:[%s186] sm:$0xff] %vm825, %v823
        %827 = vrot.lane.b32.xlu0 %v716, 80
        %v828 = vpop.permute.xlu0 %827
        %830 = vst.msk [vmem:[%s186 + $0x8] sm:$0xff] %vm788, %v828
        %831 = vrot.lane.b32.xlu0 %v716, 74
        %v832 = vpop.permute.xlu0 %831
        %834 = vst.msk [vmem:[%s186 + $0x8] sm:$0xff] %vm794, %v832
        %835 = vrot.lane.b32.xlu0 %v716, 68
        %v836 = vpop.permute.xlu0 %835
        %838 = vst.msk [vmem:[%s186 + $0x8] sm:$0xff] %vm799, %v836
        %840 = vrot.lane.b32.xlu0 %v716, 62
        %v841 = vpop.permute.xlu0 %840
        %842 = vrot.lane.b32.xlu0 %v785, 62
        %v843 = vpop.permute.xlu0 %842
        %vm844 = vcmask 506880
        %v845 = vsel %vm844, %v841, %v843
        %847 = vst.msk [vmem:[%s186 + $0x8] sm:$0xff] %vm804, %v845
        %848 = vrot.lane.b32.xlu0 %v785, 56
        %v849 = vpop.permute.xlu0 %848
        %851 = vst.msk [vmem:[%s186 + $0x8] sm:$0xff] %vm809, %v849
        %852 = vrot.lane.b32.xlu0 %v785, 50
        %v853 = vpop.permute.xlu0 %852
        %855 = vst.msk [vmem:[%s186 + $0x8] sm:$0xff] %vm814, %v853
        %856 = vrot.lane.b32.xlu0 %v785, 44
        %v857 = vpop.permute.xlu0 %856
        %859 = vst.msk [vmem:[%s186 + $0x8] sm:$0xff] %vm820, %v857
        %860 = vrot.lane.b32.xlu0 %v785, 38
        %v861 = vpop.permute.xlu0 %860
        %863 = vst.msk [vmem:[%s186 + $0x8] sm:$0xff] %vm825, %v861
        %s864 = sand.u32 %s96, 1
        %s865 = scalar_lea.sflag [#allocation5], %s864
        %s866 = sand.u32 %s96, 1
        %s867 = smul.addr %s866, 16
        %s868 = scalar_lea.vmem [#allocation6], %s867
        // Predicated region
        $region37: #{tpu_custom_call.1} parent=31 // pred_check
          %p869 = pneg %p106
        $region38: #{tpu_custom_call.1} parent=31 // pred_check_branch
          %871 = sbr.rel (%p869) target = $region40
        $region39: #{tpu_custom_call.1} parent=31 // pred_region
          %s873 = ssub.s32 256, 256
          %874 = vsyncadd %s865, %s873
          %s875 = smul.addr %s20, 2
          %s876 = smul.addr %s875, 128
          %s877 = scalar_lea.hbm %s3, %s876
          %s879 = sshll.u32 %s868, 4
          %s880 = int_to_ptr.vmem [resolvable:$true] %s879
          %882 = dma.vmem_to_hbm [thread:$0]  %s880, 256, %s877, %s865
        $region40: #{tpu_custom_call.1} parent=31 // pred_fallthru
          _
      $region32: #{tpu_custom_call.1} parent=5 // pred_fallthru
        _
      %p883 = scmp.le.s32.totalorder 2, %s15
      // Predicated region
      $region41: #{tpu_custom_call.1} parent=5 // pred_check
        %p884 = pneg %p883
      $region42: #{tpu_custom_call.1} parent=5 // pred_check_branch
        %886 = sbr.rel (%p884) target = $region44
      $region43: #{tpu_custom_call.1} parent=5 // pred_region
        %s887 = ssub.s32 %s15, 2
        // Predicated region
        $region45: #{tpu_custom_call.1} parent=43 // pred_check
          %p888 = pneg %p112
        $region46: #{tpu_custom_call.1} parent=43 // pred_check_branch
          %890 = sbr.rel (%p888) target = $region48
        $region47: #{tpu_custom_call.1} parent=43 // pred_region
          %s891 = sand.u32 %s97, 1
          %s892 = scalar_lea.sflag [#allocation5], %s891
          %s893 = sand.u32 %s97, 1
          %s894 = smul.addr %s893, 16
          %s895 = scalar_lea.vmem [#allocation6], %s894
          %896 = dma.done %s892, 256
        $region48: #{tpu_custom_call.1} parent=43 // pred_fallthru
          _
      $region44: #{tpu_custom_call.1} parent=5 // pred_fallthru
        _
    $region6: #{tpu_custom_call.1} parent=1 // loop_footer
      %s19 = sadd.s32 1, %s15
    $region7: #{tpu_custom_call.1} parent=1 // loop_footer_branch
      %14 = sbr.rel target = $region3
    $region8: #{tpu_custom_call.1} parent=1 // loop_exit
      _
    %897 = vsyncpa [#allocation4], 1
    %s898 = scalar_lea.sflag [#allocation4], 1
    %899 = vsyncpa %s898, 1
    %900 = vsyncpa [#allocation5], 1
    %s901 = scalar_lea.sflag [#allocation5], 1
    %902 = vsyncpa %s901, 1

</llo_original>
